<compile_context>
chip_gen: v7x
topology: tpu7x:2x2x1
jax: 0.10.0
libtpu: 0.0.40
codegen_flags: <defaults>
</compile_context>

<pallas_src>
import jax
import jax.numpy as jnp
from jax.experimental import pallas as pl
from jax.experimental.pallas import tpu as pltpu


def _tta_linear_kernel(x_ref, w_ref, b_ref, o_ref):
    """grid = (N_pad//tn [parallel], K//tk [arbitrary reduction]).

    x_ref : (B, tk)   symmetrized flattened image chunk
    w_ref : (tk, tn)  classifier weight tile
    b_ref : (1, tn)   classifier bias tile
    o_ref : (B, tn)   f32 logits tile (resident accumulator across the K axis)
    """
    k = pl.program_id(1)

    @pl.when(k == 0)
    def _():
        o_ref[...] = jnp.zeros_like(o_ref)

    # model forward (linear classifier) on the MXU, accumulated over K tiles
    o_ref[...] += jnp.dot(x_ref[...], w_ref[...],
                          preferred_element_type=jnp.float32)

    @pl.when(k == pl.num_programs(1) - 1)
    def _():
        # Merger(type="mean"): the 1/T scale is already folded into the
        # symmetrized input; bias cancels into a single +b.
        o_ref[...] += b_ref[...]


def classification_tta_forward(image, weight, bias, *, tk=512, tn=128):
    """image: (B, C, H, W) f32; weight: (C*H*W, N); bias: (N,). Returns (B, N)."""
    B, C, H, W = image.shape
    K = C * H * W
    N = weight.shape[1]

    # --- TTA collapse (exact because the model is linear and merge is 'mean') ---
    # mean over {id, hflip, vflip, hvflip} of (flatten(aug(x)) @ W + b)
    #   == flatten((x + hflip(x) + vflip(x) + hvflip(x)) / 4) @ W + b
    # Flips are pure data movement and stay in plain JAX glue; only ONE image's
    # worth of data enters the kernel.
    x_sym = (image
             + jnp.flip(image, axis=3)          # horizontal flip (W axis)
             + jnp.flip(image, axis=2)          # vertical flip   (H axis)
             + jnp.flip(image, axis=(2, 3))     # both
             ) * 0.25
    x_flat = x_sym.reshape(B, K)

    # --- pad N to a lane-dense multiple of 128 (zero-pad W columns and bias) ---
    N_pad = pl.cdiv(N, 128) * 128
    w_pad = jnp.zeros((K, N_pad), weight.dtype).at[:, :N].set(weight)
    b_pad = jnp.zeros((1, N_pad), bias.dtype).at[0, :N].set(bias)

    # tile sizes that divide the (small) problem exactly
    if K % tk != 0:
        tk = K
    if N_pad % tn != 0:
        tn = N_pad

    grid = (N_pad // tn, K // tk)  # (parallel over output columns, K reduction)

    out = pl.pallas_call(
        _tta_linear_kernel,
        out_shape=jax.ShapeDtypeStruct((B, N_pad), jnp.float32),
        grid=grid,
        in_specs=[
            pl.BlockSpec((B, tk), lambda n, k: (0, k)),   # image chunk
            pl.BlockSpec((tk, tn), lambda n, k: (k, n)),  # weight tile
            pl.BlockSpec((1, tn), lambda n, k: (0, n)),   # bias tile
        ],
        out_specs=pl.BlockSpec((B, tn), lambda n, k: (0, n)),  # resident acc
        compiler_params=pltpu.CompilerParams(
            dimension_semantics=("parallel", "arbitrary"),
        ),
    )(x_flat, w_pad, b_pad)

    return out[:, :N].astype(image.dtype)


def _reference_forward(image, weight, bias):
    """Pure-JAX reference of ClassificationTTAWrapper forward (mean merge)."""
    B = image.shape[0]
    variants = [
        image,
        jnp.flip(image, axis=3),
        jnp.flip(image, axis=2),
        jnp.flip(image, axis=(2, 3)),
    ]
    outs = [v.reshape(B, -1) @ weight + bias for v in variants]
    return sum(outs) / len(outs)


if __name__ == "__main__":
    key = jax.random.PRNGKey(0)
    k_img, k_w, k_b = jax.random.split(key, 3)

    B, C, H, W = 2, 4, 16, 16
    N_CLASSES = 10
    K = C * H * W

    image = jax.random.normal(k_img, (B, C, H, W), dtype=jnp.float32)
    weight = jax.random.normal(k_w, (K, N_CLASSES), dtype=jnp.float32) * 0.02
    bias = jax.random.normal(k_b, (N_CLASSES,), dtype=jnp.float32) * 0.1

    out = classification_tta_forward(image, weight, bias)
    out = jax.block_until_ready(out)

    ref = _reference_forward(image, weight, bias)
    assert out.shape == (B, N_CLASSES)
    assert jnp.allclose(out, ref, atol=1e-4, rtol=1e-4), "mismatch vs reference"

    print("KERNEL_OK")
</pallas_src>

<mosaic_0001>
module attributes {stable_mosaic.version = 11 : i64} {
  func.func @_tta_linear_kernel(%arg0: i32, %arg1: i32, %arg2: memref<2x512xf32, #tpu.memory_space<vmem>>, %arg3: memref<512x128xf32, #tpu.memory_space<vmem>>, %arg4: memref<1x128xf32, #tpu.memory_space<vmem>>, %arg5: memref<2x128xf32, #tpu.memory_space<vmem>>) attributes {dimension_semantics = [#tpu.dimension_semantics<parallel>, #tpu.dimension_semantics<arbitrary>], iteration_bounds = array<i64: 1, 2>, scalar_prefetch = 0 : i64, scratch_operands = 0 : i64, tpu.core_type = #tpu.core_type<tc>, window_params = [{transform_indices = @transform_0, window_bounds = array<i64: 2, 512>}, {transform_indices = @transform_1, window_bounds = array<i64: 512, 128>}, {transform_indices = @transform_2, window_bounds = array<i64: 1, 128>}, {transform_indices = @transform_3, window_bounds = array<i64: 2, 128>}]} {
    %c0_i32 = arith.constant 0 : i32
    %0 = arith.cmpi eq, %arg1, %c0_i32 : i32
    %1 = arith.extui %0 : i1 to i32
    %c0_i32_0 = arith.constant 0 : i32
    %2 = arith.cmpi ne, %1, %c0_i32_0 : i32
    scf.if %2 {
      %cst_9 = arith.constant 0.000000e+00 : f32
      %12 = vector.broadcast %cst_9 : f32 to vector<2x128xf32>
      %c0_10 = arith.constant 0 : index
      %c0_11 = arith.constant 0 : index
      %13 = vector.load %arg5[%c0_10, %c0_11] : memref<2x128xf32, #tpu.memory_space<vmem>>, vector<2x128xf32>
      tpu.vector_store %arg5[%c0_10, %c0_11], %12 {strides = array<i32>} : memref<2x128xf32, #tpu.memory_space<vmem>>, vector<2x128xf32>,
    } else {
    }
    %c0 = arith.constant 0 : index
    %c0_1 = arith.constant 0 : index
    %3 = vector.load %arg5[%c0, %c0_1] : memref<2x128xf32, #tpu.memory_space<vmem>>, vector<2x128xf32>
    %c0_2 = arith.constant 0 : index
    %c0_3 = arith.constant 0 : index
    %4 = vector.load %arg2[%c0_2, %c0_3] : memref<2x512xf32, #tpu.memory_space<vmem>>, vector<2x512xf32>
    %c0_4 = arith.constant 0 : index
    %c0_5 = arith.constant 0 : index
    %5 = vector.load %arg3[%c0_4, %c0_5] : memref<512x128xf32, #tpu.memory_space<vmem>>, vector<512x128xf32>
    %cst = arith.constant dense<0.000000e+00> : vector<2x128xf32>
    %6 = tpu.matmul %4, %5, %cst {dimension_numbers = #tpu.dot_dimension_numbers<[1], [0], [0], [1], [0, 0, 1, 1], [], []>} : vector<2x512xf32>, vector<512x128xf32>, vector<2x128xf32> -> vector<2x128xf32>
    %7 = arith.addf %3, %6 : vector<2x128xf32>
    %c0_6 = arith.constant 0 : index
    %c0_7 = arith.constant 0 : index
    %8 = vector.load %arg5[%c0_6, %c0_7] : memref<2x128xf32, #tpu.memory_space<vmem>>, vector<2x128xf32>
    tpu.vector_store %arg5[%c0_6, %c0_7], %7 {strides = array<i32>} : memref<2x128xf32, #tpu.memory_space<vmem>>, vector<2x128xf32>,
    %c1_i32 = arith.constant 1 : i32
    %9 = arith.cmpi eq, %arg1, %c1_i32 : i32
    %10 = arith.extui %9 : i1 to i32
    %c0_i32_8 = arith.constant 0 : i32
    %11 = arith.cmpi ne, %10, %c0_i32_8 : i32
    scf.if %11 {
      %c0_9 = arith.constant 0 : index
      %c0_10 = arith.constant 0 : index
      %12 = vector.load %arg5[%c0_9, %c0_10] : memref<2x128xf32, #tpu.memory_space<vmem>>, vector<2x128xf32>
      %c0_11 = arith.constant 0 : index
      %c0_12 = arith.constant 0 : index
      %13 = vector.load %arg4[%c0_11, %c0_12] : memref<1x128xf32, #tpu.memory_space<vmem>>, vector<1x128xf32>
      %14 = vector.broadcast %13 : vector<1x128xf32> to vector<2x128xf32>
      %15 = arith.addf %12, %14 : vector<2x128xf32>
      %c0_13 = arith.constant 0 : index
      %c0_14 = arith.constant 0 : index
      %16 = vector.load %arg5[%c0_13, %c0_14] : memref<2x128xf32, #tpu.memory_space<vmem>>, vector<2x128xf32>
      tpu.vector_store %arg5[%c0_13, %c0_14], %15 {strides = array<i32>} : memref<2x128xf32, #tpu.memory_space<vmem>>, vector<2x128xf32>,
    } else {
    }
    return
  }
  func.func @transform_0(%arg0: i32, %arg1: i32) -> (i32, i32) {
    %c0_i32 = arith.constant 0 : i32
    %c0_i32_0 = arith.constant 0 : i32
    return %c0_i32, %arg1 : i32, i32
  }
  func.func @transform_1(%arg0: i32, %arg1: i32) -> (i32, i32) {
    %c0_i32 = arith.constant 0 : i32
    return %arg1, %arg0 : i32, i32
  }
  func.func @transform_2(%arg0: i32, %arg1: i32) -> (i32, i32) {
    %c0_i32 = arith.constant 0 : i32
    %c0_i32_0 = arith.constant 0 : i32
    return %c0_i32, %arg0 : i32, i32
  }
  func.func @transform_3(%arg0: i32, %arg1: i32) -> (i32, i32) {
    %c0_i32 = arith.constant 0 : i32
    %c0_i32_0 = arith.constant 0 : i32
    return %c0_i32, %arg0 : i32, i32
  }
}

</mosaic_0001>

<llo_original>
// kernel: tpu_custom_call.1
$region0: #{tpu_custom_call.1}
  #allocation0 [shape = 'u32[]', space=smem, size = 0x4, offset = 0x4, fixed_abs, tag = 'smem constant byte address 0x4 - core index']
  #allocation1 [shape = 'u32[144,128]{1,0:T(1,128)}', space=vmem, size = 0x12000, scoped, tag = 'internal scratch']
  %s0 = inlined_call_operand.hbm [shape: f32[2,1024], index: 0, kind: input, shape index: {}]
  %s1 = inlined_call_operand.hbm [shape: f32[1024,128], index: 1, kind: input, shape index: {}]
  %s2 = inlined_call_operand.vmem [shape: f32[1,128], index: 2, kind: input, shape index: {}]
  %s3 = inlined_call_operand.hbm [shape: f32[2,128], index: 3, kind: output, shape index: {}]
  %s4 = sld [smem:[#allocation0]]
  $region61: #{tpu_custom_call.1} parent=0
    _
  %s6 = ssub.s32 1, %s4
  %s7 = scalar_select 0, %s6, %s4
  $region1: #{tpu_custom_call.1} parent=0
    #allocation2 [shape = 'u8[8192]{0}', space=vmem, size = 0x2000, scoped, tag = 'input window, operand 0']
    #allocation3 [shape = 's32[2]{0}', space=sflag, size = 0x8, scoped, tag = 'scoped memory for tpu_custom_call.1']
    #allocation4 [shape = 's32[2]{0}', space=sflag, size = 0x8, scoped, tag = 'scoped memory for tpu_custom_call.1']
    #allocation5 [shape = 'u8[524288]{0}', space=vmem, size = 0x80000, scoped, tag = 'input window, operand 1']
    #allocation6 [shape = 's32[2]{0}', space=sflag, size = 0x8, scoped, tag = 'scoped memory for tpu_custom_call.1']
    #allocation7 [shape = 'u8[1024]{0}', space=vmem, size = 0x400, scoped, tag = 'output window, operand 0, single buffered']
    %8 = vsyncpa [#allocation3], 0
    %s9 = scalar_lea.sflag [#allocation3], 1
    %10 = vsyncpa %s9, 0
    %11 = vsyncpa [#allocation6], 0
    %s12 = scalar_lea.sflag [#allocation6], 1
    %13 = vsyncpa %s12, 0
    %14 = vsyncpa [#allocation4], 0
    loop: start=0, step=1, limit=4
    $region2: #{tpu_custom_call.1} parent=1 // loop_pre_header
      _
    $region3: #{tpu_custom_call.1} parent=1 // loop_header
      %s16 = sphi 0, %s20
      %p17 = scmp.ge.s32.totalorder %s16, 4
      %s23 = sphi 0, %s35
      %s24 = sphi 0, %s31
      %s25 = sphi 0, %s23
      %s26 = sphi 0, %s24
      %s27 = sphi 0, %s25
      %s28 = sphi 0, %s26
      %s38 = sphi 0, %s40
      %s41 = sphi 0, %s38
      %s42 = sphi 0, %s41
      %s58 = sphi 0, %s42
      %s66 = sphi 0, %s68
      %s69 = sphi 0, %s66
      %s70 = sphi 0, %s69
      %s86 = sphi 0, %s70
      %s92 = sphi 0, %s94
      %s95 = sphi 0, %s92
      %s96 = sphi 0, %s95
      %s112 = sphi 0, %s96
      %s118 = sphi 0, %s120
      %s121 = sphi 0, %s118
      %s122 = sphi 0, %s121
      %s138 = sphi 0, %s122
    $region4: #{tpu_custom_call.1} parent=1 // loop_header_branch
      %19 = sbr.rel (%p17) target = $region8
    $region5: #{tpu_custom_call.1} parent=1 // loop_body
      %s21 = ssub.s32 %s16, 1
      %s22 = ssub.s32 %s16, 2
      %s29 = sadd.s32 1, %s24
      %p30 = scmp.ge.s32.totalorder %s29, 2
      %s31 = scalar_select %p30, 0, %s29
      %s32 = sadd.s32 1, %s23
      %s33 = scalar_select %p30, %s32, %s23
      %p34 = scmp.ge.s32.totalorder %s33, 1
      %s35 = scalar_select %p34, 0, %s33
      %s36 = ssub.s32 %s24, %s31
      %p37 = scmp.eq.s32.totalorder %s36, 0
      %s39 = sadd.s32 %s38, 1
      %s40 = scalar_select %p37, %s38, %s39
      %p43 = pneg %p37
      %p44 = scmp.eq.s32.totalorder %s16, 1
      %p45 = por %p43, %p44
      %p46 = scmp.ne.s32.totalorder %s38, %s41
      %p47 = scmp.eq.s32.totalorder %s16, 0
      %p48 = por %p46, %p47
      %p49 = scmp.ne.s32.totalorder %s38, %s41
      %p50 = scmp.eq.s32.totalorder %s21, 1
      %p51 = por %p49, %p50
      %p52 = scmp.ne.s32.totalorder %s41, %s42
      %p53 = scmp.eq.s32.totalorder %s21, 0
      %p54 = por %p52, %p53
      %p55 = scmp.ne.s32.totalorder %s41, %s42
      %p56 = scmp.eq.s32.totalorder %s22, 1
      %p57 = por %p55, %p56
      %p59 = scmp.ne.s32.totalorder %s42, %s58
      %p60 = scmp.eq.s32.totalorder %s22, 0
      %p61 = por %p59, %p60
      %s62 = ssub.s32 %s24, %s31
      %s63 = ssub.s32 %s23, %s35
      %s64 = sor.u32 %s62, %s63
      %p65 = scmp.eq.s32.totalorder %s64, 0
      %s67 = sadd.s32 %s66, 1
      %s68 = scalar_select %p65, %s66, %s67
      %p71 = pneg %p65
      %p72 = scmp.eq.s32.totalorder %s16, 1
      %p73 = por %p71, %p72
      %p74 = scmp.ne.s32.totalorder %s66, %s69
      %p75 = scmp.eq.s32.totalorder %s16, 0
      %p76 = por %p74, %p75
      %p77 = scmp.ne.s32.totalorder %s66, %s69
      %p78 = scmp.eq.s32.totalorder %s21, 1
      %p79 = por %p77, %p78
      %p80 = scmp.ne.s32.totalorder %s69, %s70
      %p81 = scmp.eq.s32.totalorder %s21, 0
      %p82 = por %p80, %p81
      %p83 = scmp.ne.s32.totalorder %s69, %s70
      %p84 = scmp.eq.s32.totalorder %s22, 1
      %p85 = por %p83, %p84
      %p87 = scmp.ne.s32.totalorder %s70, %s86
      %p88 = scmp.eq.s32.totalorder %s22, 0
      %p89 = por %p87, %p88
      %s90 = ssub.s32 %s23, %s35
      %p91 = scmp.eq.s32.totalorder %s90, 0
      %s93 = sadd.s32 %s92, 1
      %s94 = scalar_select %p91, %s92, %s93
      %p97 = pneg %p91
      %p98 = scmp.eq.s32.totalorder %s16, 1
      %p99 = por %p97, %p98
      %p100 = scmp.ne.s32.totalorder %s92, %s95
      %p101 = scmp.eq.s32.totalorder %s16, 0
      %p102 = por %p100, %p101
      %p103 = scmp.ne.s32.totalorder %s92, %s95
      %p104 = scmp.eq.s32.totalorder %s21, 1
      %p105 = por %p103, %p104
      %p106 = scmp.ne.s32.totalorder %s95, %s96
      %p107 = scmp.eq.s32.totalorder %s21, 0
      %p108 = por %p106, %p107
      %p109 = scmp.ne.s32.totalorder %s95, %s96
      %p110 = scmp.eq.s32.totalorder %s22, 1
      %p111 = por %p109, %p110
      %p113 = scmp.ne.s32.totalorder %s96, %s112
      %p114 = scmp.eq.s32.totalorder %s22, 0
      %p115 = por %p113, %p114
      %s116 = ssub.s32 %s23, %s35
      %p117 = scmp.eq.s32.totalorder %s116, 0
      %s119 = sadd.s32 %s118, 1
      %s120 = scalar_select %p117, %s118, %s119
      %p123 = pneg %p117
      %p124 = scmp.eq.s32.totalorder %s16, 1
      %p125 = por %p123, %p124
      %p126 = scmp.ne.s32.totalorder %s118, %s121
      %p127 = scmp.eq.s32.totalorder %s16, 0
      %p128 = por %p126, %p127
      %p129 = scmp.ne.s32.totalorder %s118, %s121
      %p130 = scmp.eq.s32.totalorder %s21, 1
      %p131 = por %p129, %p130
      %p132 = scmp.ne.s32.totalorder %s121, %s122
      %p133 = scmp.eq.s32.totalorder %s21, 0
      %p134 = por %p132, %p133
      %p135 = scmp.ne.s32.totalorder %s121, %s122
      %p136 = scmp.eq.s32.totalorder %s22, 1
      %p137 = por %p135, %p136
      %p139 = scmp.ne.s32.totalorder %s122, %s138
      %p140 = scmp.eq.s32.totalorder %s22, 0
      %p141 = por %p139, %p140
      %p142 = scmp.le.s32.totalorder 1, %s16
      %p143 = scmp.lt.s32.totalorder %s16, 3
      %p144 = pnand %p142, %p143
      %p145 = pneg %p144
      // Predicated region
      $region9: #{tpu_custom_call.1} parent=5 // pred_check
        _
      $region10: #{tpu_custom_call.1} parent=5 // pred_check_branch
        %147 = sbr.rel (%p144) target = $region12
      $region11: #{tpu_custom_call.1} parent=5 // pred_region
        %s148 = ssub.s32 %s16, 1
        // Predicated region
        $region13: #{tpu_custom_call.1} parent=11 // pred_check
          %p149 = pneg %p108
        $region14: #{tpu_custom_call.1} parent=11 // pred_check_branch
          %151 = sbr.rel (%p149) target = $region16
        $region15: #{tpu_custom_call.1} parent=11 // pred_region
          %p152 = scmp.lt.s32.totalorder %s25, 0
          %s153 = scalar_select %p152, %s25, 0
          %s154 = scalar_lea.vmem %s2, %s153
        $region16: #{tpu_custom_call.1} parent=11 // pred_fallthru
          _
      $region12: #{tpu_custom_call.1} parent=5 // pred_fallthru
        _
      %p155 = scmp.lt.s32.totalorder %s16, 2
      // Predicated region
      $region17: #{tpu_custom_call.1} parent=5 // pred_check
        %p156 = pneg %p155
      $region18: #{tpu_custom_call.1} parent=5 // pred_check_branch
        %158 = sbr.rel (%p156) target = $region20
      $region19: #{tpu_custom_call.1} parent=5 // pred_region
        // Predicated region
        $region21: #{tpu_custom_call.1} parent=19 // pred_check
          %p159 = pneg %p48
        $region22: #{tpu_custom_call.1} parent=19 // pred_check_branch
          %161 = sbr.rel (%p159) target = $region24
        $region23: #{tpu_custom_call.1} parent=19 // pred_region
          %s162 = sand.u32 %s38, 1
          %s163 = scalar_lea.sflag [#allocation3], %s162
          %s164 = sand.u32 %s38, 1
          %s165 = smul.addr %s164, 8
          %s166 = scalar_lea.vmem [#allocation2], %s165
          %s167 = smul.u32 4, %s24
          %s169 = ssub.s32 128, 128
          %170 = vsyncadd %s163, %s169
          %s171 = smul.addr %s167, 32
          %s172 = scalar_lea.hbm %s0, %s171
          %s174 = sshll.u32 %s166, 4
          %s175 = int_to_ptr.vmem [resolvable:$true] %s174
          %177 = dma.hbm_to_vmem [thread:$0]  %s172, 128, %s175, %s163
        $region24: #{tpu_custom_call.1} parent=19 // pred_fallthru
          _
        // Predicated region
        $region25: #{tpu_custom_call.1} parent=19 // pred_check
          %p178 = pneg %p76
        $region26: #{tpu_custom_call.1} parent=19 // pred_check_branch
          %180 = sbr.rel (%p178) target = $region28
        $region27: #{tpu_custom_call.1} parent=19 // pred_region
          %s181 = sand.u32 %s66, 1
          %s182 = scalar_lea.sflag [#allocation6], %s181
          %s183 = sand.u32 %s66, 1
          %s184 = smul.addr %s183, 512
          %s185 = scalar_lea.vmem [#allocation5], %s184
          %s186 = smul.u32 64, %s24
          %s188 = ssub.s32 8192, 8192
          %189 = vsyncadd %s182, %s188
          %s190 = sadd.s32 %s23, %s186
          %s191 = smul.addr %s190, 128
          %s192 = scalar_lea.hbm %s1, %s191
          %s193 = sshll.u32 %s185, 4
          %s194 = int_to_ptr.vmem [resolvable:$true] %s193
          %199 = dma.hbm_to_vmem [thread:$0]  %s192, 8192, %s194, %s182, 128, 128, 8
        $region28: #{tpu_custom_call.1} parent=19 // pred_fallthru
          _
      $region20: #{tpu_custom_call.1} parent=5 // pred_fallthru
        _
      %p200 = scmp.le.s32.totalorder 1, %s16
      %p201 = scmp.lt.s32.totalorder %s16, 3
      %p202 = pnand %p200, %p201
      %p203 = pneg %p202
      // Predicated region
      $region29: #{tpu_custom_call.1} parent=5 // pred_check
        _
      $region30: #{tpu_custom_call.1} parent=5 // pred_check_branch
        %205 = sbr.rel (%p202) target = $region32
      $region31: #{tpu_custom_call.1} parent=5 // pred_region
        %s206 = ssub.s32 %s16, 1
        %s207 = sand.u32 %s41, 1
        %s208 = scalar_lea.sflag [#allocation3], %s207
        %s209 = sand.u32 %s41, 1
        %s210 = smul.addr %s209, 8
        %s211 = scalar_lea.vmem [#allocation2], %s210
        // Predicated region
        $region33: #{tpu_custom_call.1} parent=31 // pred_check
          %p212 = pneg %p54
        $region34: #{tpu_custom_call.1} parent=31 // pred_check_branch
          %214 = sbr.rel (%p212) target = $region36
        $region35: #{tpu_custom_call.1} parent=31 // pred_region
          %215 = dma.done %s208, 128
        $region36: #{tpu_custom_call.1} parent=31 // pred_fallthru
          _
        %s216 = sand.u32 %s69, 1
        %s217 = scalar_lea.sflag [#allocation6], %s216
        %s218 = sand.u32 %s69, 1
        %s219 = smul.addr %s218, 512
        %s220 = scalar_lea.vmem [#allocation5], %s219
        // Predicated region
        $region37: #{tpu_custom_call.1} parent=31 // pred_check
          %p221 = pneg %p82
        $region38: #{tpu_custom_call.1} parent=31 // pred_check_branch
          %223 = sbr.rel (%p221) target = $region40
        $region39: #{tpu_custom_call.1} parent=31 // pred_region
          %224 = dma.done %s217, 8192
        $region40: #{tpu_custom_call.1} parent=31 // pred_fallthru
          _
        %s225 = sand.u32 %s41, 1
        %s226 = scalar_lea.sflag [#allocation3], %s225
        %s227 = sand.u32 %s41, 1
        %s228 = smul.addr %s227, 8
        %s229 = scalar_lea.vmem [#allocation2], %s228
        %p230 = pneg %p54
        %p231 = pneg %p51
        %s232 = sand.u32 %s69, 1
        %s233 = scalar_lea.sflag [#allocation6], %s232
        %s234 = sand.u32 %s69, 1
        %s235 = smul.addr %s234, 512
        %s236 = scalar_lea.vmem [#allocation5], %s235
        %p237 = pneg %p82
        %p238 = pneg %p79
        %p239 = scmp.lt.s32.totalorder %s25, 0
        %s240 = scalar_select %p239, %s25, 0
        %s241 = scalar_lea.vmem %s2, %s240
        %p242 = pneg %p108
        %p243 = pneg %p105
        %p244 = pneg %p134
        %p245 = pneg %p131
        %s246 = smul.u32 4, %s26
        %s247 = smul.u32 64, %s26
        %p248 = scmp.lt.s32.totalorder %s25, 0
        %s249 = scalar_select %p248, %s25, 0
        %s250 = scalar_lea.vmem %s2, %s249
        %p251 = scmp.eq.s32.totalorder %s26, 0
        // Predicated region
        $region41: #{tpu_custom_call.1} parent=31 // pred_check
          %p252 = pneg %p251
        $region42: #{tpu_custom_call.1} parent=31 // pred_check_branch
          %254 = sbr.rel (%p252) target = $region44
        $region43: #{tpu_custom_call.1} parent=31 // pred_region
          %255 = vst [vmem:[#allocation7] sm:$0x3] 0.0
        $region44: #{tpu_custom_call.1} parent=31 // pred_fallthru
          _
        %v256 = vld [vmem:[#allocation7] sm:$0x3]
        %v257 = vld [vmem:[%s211] sm:$0xff]
        %v258 = vld [vmem:[%s220] sm:$0xff]
        %v259 = vld [vmem:[%s220 + $0x8] sm:$0xff]
        %v260 = vld [vmem:[%s220 + $0x10] sm:$0xff]
        %v261 = vld [vmem:[%s220 + $0x18] sm:$0xff]
        %v262 = vld [vmem:[%s220 + $0x20] sm:$0xff]
        %v263 = vld [vmem:[%s220 + $0x28] sm:$0xff]
        %v264 = vld [vmem:[%s220 + $0x30] sm:$0xff]
        %v265 = vld [vmem:[%s220 + $0x38] sm:$0xff]
        %v266 = vld [vmem:[%s220 + $0x40] sm:$0xff]
        %v267 = vld [vmem:[%s220 + $0x48] sm:$0xff]
        %v268 = vld [vmem:[%s220 + $0x50] sm:$0xff]
        %v269 = vld [vmem:[%s220 + $0x58] sm:$0xff]
        %v270 = vld [vmem:[%s220 + $0x60] sm:$0xff]
        %v271 = vld [vmem:[%s220 + $0x68] sm:$0xff]
        %v272 = vld [vmem:[%s220 + $0x70] sm:$0xff]
        %v273 = vld [vmem:[%s220 + $0x78] sm:$0xff]
        %v274 = vld [vmem:[%s220 + $0x80] sm:$0xff]
        %v275 = vld [vmem:[%s220 + $0x88] sm:$0xff]
        %v276 = vld [vmem:[%s220 + $0x90] sm:$0xff]
        %v277 = vld [vmem:[%s220 + $0x98] sm:$0xff]
        %v278 = vld [vmem:[%s220 + $0xa0] sm:$0xff]
        %v279 = vld [vmem:[%s220 + $0xa8] sm:$0xff]
        %v280 = vld [vmem:[%s220 + $0xb0] sm:$0xff]
        %v281 = vld [vmem:[%s220 + $0xb8] sm:$0xff]
        %v282 = vld [vmem:[%s220 + $0xc0] sm:$0xff]
        %v283 = vld [vmem:[%s220 + $0xc8] sm:$0xff]
        %v284 = vld [vmem:[%s220 + $0xd0] sm:$0xff]
        %v285 = vld [vmem:[%s220 + $0xd8] sm:$0xff]
        %v286 = vld [vmem:[%s220 + $0xe0] sm:$0xff]
        %v287 = vld [vmem:[%s220 + $0xe8] sm:$0xff]
        %v288 = vld [vmem:[%s220 + $0xf0] sm:$0xff]
        %v289 = vld [vmem:[%s220 + $0xf8] sm:$0xff]
        %v290 = vld [vmem:[%s220 + $0x100] sm:$0xff]
        %v291 = vld [vmem:[%s220 + $0x108] sm:$0xff]
        %v292 = vld [vmem:[%s220 + $0x110] sm:$0xff]
        %v293 = vld [vmem:[%s220 + $0x118] sm:$0xff]
        %v294 = vld [vmem:[%s220 + $0x120] sm:$0xff]
        %v295 = vld [vmem:[%s220 + $0x128] sm:$0xff]
        %v296 = vld [vmem:[%s220 + $0x130] sm:$0xff]
        %v297 = vld [vmem:[%s220 + $0x138] sm:$0xff]
        %v298 = vld [vmem:[%s220 + $0x140] sm:$0xff]
        %v299 = vld [vmem:[%s220 + $0x148] sm:$0xff]
        %v300 = vld [vmem:[%s220 + $0x150] sm:$0xff]
        %v301 = vld [vmem:[%s220 + $0x158] sm:$0xff]
        %v302 = vld [vmem:[%s220 + $0x160] sm:$0xff]
        %v303 = vld [vmem:[%s220 + $0x168] sm:$0xff]
        %v304 = vld [vmem:[%s220 + $0x170] sm:$0xff]
        %v305 = vld [vmem:[%s220 + $0x178] sm:$0xff]
        %v306 = vld [vmem:[%s220 + $0x180] sm:$0xff]
        %v307 = vld [vmem:[%s220 + $0x188] sm:$0xff]
        %v308 = vld [vmem:[%s220 + $0x190] sm:$0xff]
        %v309 = vld [vmem:[%s220 + $0x198] sm:$0xff]
        %v310 = vld [vmem:[%s220 + $0x1a0] sm:$0xff]
        %v311 = vld [vmem:[%s220 + $0x1a8] sm:$0xff]
        %v312 = vld [vmem:[%s220 + $0x1b0] sm:$0xff]
        %v313 = vld [vmem:[%s220 + $0x1b8] sm:$0xff]
        %v314 = vld [vmem:[%s220 + $0x1c0] sm:$0xff]
        %v315 = vld [vmem:[%s220 + $0x1c8] sm:$0xff]
        %v316 = vld [vmem:[%s220 + $0x1d0] sm:$0xff]
        %v317 = vld [vmem:[%s220 + $0x1d8] sm:$0xff]
        %v318 = vld [vmem:[%s220 + $0x1e0] sm:$0xff]
        %v319 = vld [vmem:[%s220 + $0x1e8] sm:$0xff]
        %v320 = vld [vmem:[%s220 + $0x1f0] sm:$0xff]
        %v321 = vld [vmem:[%s220 + $0x1f8] sm:$0xff]
        %v323 = vcombine.high %v257, %v257
        %v325 = vunpack.c.l.s4 1983009808
        %v326 = vunpack.c.0.s8 %v325
        %v327 = vlaneseq
        %v328 = vshrl.u32 %v327, 7
        %v329 = vsub.s32 %v326, %v328
        %v330 = vrot.slane %v257, %v329
        %v332 = vunpack.c.l.s4 1983009808
        %v333 = vunpack.c.0.s8 %v332
        %v334 = vlaneseq
        %v335 = vshrl.u32 %v334, 7
        %v336 = vsub.s32 %v333, %v335
        %v337 = vrot.slane %v323, %v336
        %v338 = vcombine.high %v330, %v330
        %v339 = vcombine.high %v337, %v337
        %344 = vmatprep.subr.mxu0 0.0
        %345 = vmatpush1.msra.mxu0 %v258
        %346 = vmatprep.subr.mxu0 0.0
        %347 = vmatpush1.msra.mxu0 %v259
        %348 = vmatprep.subr.mxu0 0.0
        %349 = vmatpush1.msra.mxu0 %v260
        %350 = vmatprep.subr.mxu0 0.0
        %351 = vmatpush1.msra.mxu0 %v261
        %352 = vmatprep.subr.mxu0 0.0
        %353 = vmatpush1.msra.mxu0 %v262
        %354 = vmatprep.subr.mxu0 0.0
        %355 = vmatpush1.msra.mxu0 %v263
        %356 = vmatprep.subr.mxu0 0.0
        %357 = vmatpush1.msra.mxu0 %v264
        %358 = vmatprep.subr.mxu0 0.0
        %359 = vmatpush1.msra.mxu0 %v265
        %360 = vmatprep.subr.mxu0 0.0
        %361 = vmatpush1.msra.mxu0 %v266
        %362 = vmatprep.subr.mxu0 0.0
        %363 = vmatpush1.msra.mxu0 %v267
        %364 = vmatprep.subr.mxu0 0.0
        %365 = vmatpush1.msra.mxu0 %v268
        %366 = vmatprep.subr.mxu0 0.0
        %367 = vmatpush1.msra.mxu0 %v269
        %368 = vmatprep.subr.mxu0 0.0
        %369 = vmatpush1.msra.mxu0 %v270
        %370 = vmatprep.subr.mxu0 0.0
        %371 = vmatpush1.msra.mxu0 %v271
        %372 = vmatprep.subr.mxu0 0.0
        %373 = vmatpush1.msra.mxu0 %v272
        %374 = vmatprep.subr.mxu0 0.0
        %375 = vmatpush1.msra.mxu0 %v273
        %376 = vmatprep.subr.mxu0 0.0
        %377 = vmatpush1.msra.mxu0 %v274
        %378 = vmatprep.subr.mxu0 0.0
        %379 = vmatpush1.msra.mxu0 %v275
        %380 = vmatprep.subr.mxu0 0.0
        %381 = vmatpush1.msra.mxu0 %v276
        %382 = vmatprep.subr.mxu0 0.0
        %383 = vmatpush1.msra.mxu0 %v277
        %384 = vmatprep.subr.mxu0 0.0
        %385 = vmatpush1.msra.mxu0 %v278
        %386 = vmatprep.subr.mxu0 0.0
        %387 = vmatpush1.msra.mxu0 %v279
        %388 = vmatprep.subr.mxu0 0.0
        %389 = vmatpush1.msra.mxu0 %v280
        %390 = vmatprep.subr.mxu0 0.0
        %391 = vmatpush1.msra.mxu0 %v281
        %392 = vmatprep.subr.mxu0 0.0
        %393 = vmatpush1.msra.mxu0 %v282
        %394 = vmatprep.subr.mxu0 0.0
        %395 = vmatpush1.msra.mxu0 %v283
        %396 = vmatprep.subr.mxu0 0.0
        %397 = vmatpush1.msra.mxu0 %v284
        %398 = vmatprep.subr.mxu0 0.0
        %399 = vmatpush1.msra.mxu0 %v285
        %400 = vmatprep.subr.mxu0 0.0
        %401 = vmatpush1.msra.mxu0 %v286
        %402 = vmatprep.subr.mxu0 0.0
        %403 = vmatpush1.msra.mxu0 %v287
        %404 = vmatprep.subr.mxu0 0.0
        %405 = vmatpush1.msra.mxu0 %v288
        %406 = vmatprep.subr.mxu0 0.0
        %407 = vmatpush1.msra.mxu0 %v289
        %408 = vmatprep.mubr.f32.mxu0 %v338
        %409 = vmatmul.mubr.f32.gmra.mrb[0].mxu0 %v330
        %v410 = vpop.f32.mrb[0].mxu0
        %v411 = vadd.f32 0.0, %v410
        %v412 = vpop.f32.mrb[0].mxu0
        %413 = vdwg.mxu0
        %414 = vmatprep.subr.mxu0 0.0
        %415 = vmatpush1.msra.mxu0 %v290
        %416 = vmatprep.subr.mxu0 0.0
        %417 = vmatpush1.msra.mxu0 %v291
        %418 = vmatprep.subr.mxu0 0.0
        %419 = vmatpush1.msra.mxu0 %v292
        %420 = vmatprep.subr.mxu0 0.0
        %421 = vmatpush1.msra.mxu0 %v293
        %422 = vmatprep.subr.mxu0 0.0
        %423 = vmatpush1.msra.mxu0 %v294
        %424 = vmatprep.subr.mxu0 0.0
        %425 = vmatpush1.msra.mxu0 %v295
        %426 = vmatprep.subr.mxu0 0.0
        %427 = vmatpush1.msra.mxu0 %v296
        %428 = vmatprep.subr.mxu0 0.0
        %429 = vmatpush1.msra.mxu0 %v297
        %430 = vmatprep.subr.mxu0 0.0
        %431 = vmatpush1.msra.mxu0 %v298
        %432 = vmatprep.subr.mxu0 0.0
        %433 = vmatpush1.msra.mxu0 %v299
        %434 = vmatprep.subr.mxu0 0.0
        %435 = vmatpush1.msra.mxu0 %v300
        %436 = vmatprep.subr.mxu0 0.0
        %437 = vmatpush1.msra.mxu0 %v301
        %438 = vmatprep.subr.mxu0 0.0
        %439 = vmatpush1.msra.mxu0 %v302
        %440 = vmatprep.subr.mxu0 0.0
        %441 = vmatpush1.msra.mxu0 %v303
        %442 = vmatprep.subr.mxu0 0.0
        %443 = vmatpush1.msra.mxu0 %v304
        %444 = vmatprep.subr.mxu0 0.0
        %445 = vmatpush1.msra.mxu0 %v305
        %446 = vmatprep.subr.mxu0 0.0
        %447 = vmatpush1.msra.mxu0 %v306
        %448 = vmatprep.subr.mxu0 0.0
        %449 = vmatpush1.msra.mxu0 %v307
        %450 = vmatprep.subr.mxu0 0.0
        %451 = vmatpush1.msra.mxu0 %v308
        %452 = vmatprep.subr.mxu0 0.0
        %453 = vmatpush1.msra.mxu0 %v309
        %454 = vmatprep.subr.mxu0 0.0
        %455 = vmatpush1.msra.mxu0 %v310
        %456 = vmatprep.subr.mxu0 0.0
        %457 = vmatpush1.msra.mxu0 %v311
        %458 = vmatprep.subr.mxu0 0.0
        %459 = vmatpush1.msra.mxu0 %v312
        %460 = vmatprep.subr.mxu0 0.0
        %461 = vmatpush1.msra.mxu0 %v313
        %462 = vmatprep.subr.mxu0 0.0
        %463 = vmatpush1.msra.mxu0 %v314
        %464 = vmatprep.subr.mxu0 0.0
        %465 = vmatpush1.msra.mxu0 %v315
        %466 = vmatprep.subr.mxu0 0.0
        %467 = vmatpush1.msra.mxu0 %v316
        %468 = vmatprep.subr.mxu0 0.0
        %469 = vmatpush1.msra.mxu0 %v317
        %470 = vmatprep.subr.mxu0 0.0
        %471 = vmatpush1.msra.mxu0 %v318
        %472 = vmatprep.subr.mxu0 0.0
        %473 = vmatpush1.msra.mxu0 %v319
        %474 = vmatprep.subr.mxu0 0.0
        %475 = vmatpush1.msra.mxu0 %v320
        %476 = vmatprep.subr.mxu0 0.0
        %477 = vmatpush1.msra.mxu0 %v321
        %478 = vmatprep.mubr.f32.mxu0 %v339
        %479 = vmatmul.mubr.f32.gmra.mrb[0].mxu0 %v337
        %v480 = vpop.f32.mrb[0].mxu0
        %v481 = vadd.f32 %v411, %v480
        %v482 = vpop.f32.mrb[0].mxu0
        %483 = vdwg.mxu0
        %v484 = vadd.f32 %v256, %v481
        %485 = vst [vmem:[#allocation7] sm:$0x3] %v484
        %p486 = scmp.eq.s32.totalorder %s26, 1
        // Predicated region
        $region45: #{tpu_custom_call.1} parent=31 // pred_check
          %p487 = pneg %p486
        $region46: #{tpu_custom_call.1} parent=31 // pred_check_branch
          %489 = sbr.rel (%p487) target = $region48
        $region47: #{tpu_custom_call.1} parent=31 // pred_region
          %v490 = vld [vmem:[#allocation7] sm:$0x3]
          %v491 = vld [vmem:[%s250] sm:$0x1]
          %v493 = vlaneseq
          %v494 = vshrl.u32 %v493, 7
          %v495 = vsub.s32 0, %v494
          %v496 = vrot.slane %v491, %v495
          %v498 = vadd.f32 %v490, %v496
          %499 = vst [vmem:[#allocation7] sm:$0x3] %v498
        $region48: #{tpu_custom_call.1} parent=31 // pred_fallthru
          _
        // Predicated region
        $region49: #{tpu_custom_call.1} parent=31 // pred_check
          %p500 = pneg %p131
        $region50: #{tpu_custom_call.1} parent=31 // pred_check_branch
          %502 = sbr.rel (%p500) target = $region52
        $region51: #{tpu_custom_call.1} parent=31 // pred_region
          %s504 = ssub.s32 32, 32
          %505 = vsyncadd [#allocation4], %s504
          %s506 = smul.addr %s25, 32
          %s507 = scalar_lea.hbm %s3, %s506
          %s509 = sshll.u32 [#allocation7], 4
          %s510 = int_to_ptr.vmem [resolvable:$true] %s509
          %512 = dma.vmem_to_hbm [thread:$0]  %s510, 32, %s507, [#allocation4]
        $region52: #{tpu_custom_call.1} parent=31 // pred_fallthru
          _
        // Predicated region
        $region53: #{tpu_custom_call.1} parent=31 // pred_check
          %p513 = pneg %p131
        $region54: #{tpu_custom_call.1} parent=31 // pred_check_branch
          %515 = sbr.rel (%p513) target = $region56
        $region55: #{tpu_custom_call.1} parent=31 // pred_region
          %516 = dma.done [#allocation4], 32
        $region56: #{tpu_custom_call.1} parent=31 // pred_fallthru
          _
      $region32: #{tpu_custom_call.1} parent=5 // pred_fallthru
        _
      %p517 = scmp.le.s32.totalorder 2, %s16
      // Predicated region
      $region57: #{tpu_custom_call.1} parent=5 // pred_check
        %p518 = pneg %p517
      $region58: #{tpu_custom_call.1} parent=5 // pred_check_branch
        %520 = sbr.rel (%p518) target = $region60
      $region59: #{tpu_custom_call.1} parent=5 // pred_region
        %s521 = ssub.s32 %s16, 2
      $region60: #{tpu_custom_call.1} parent=5 // pred_fallthru
        _
    $region6: #{tpu_custom_call.1} parent=1 // loop_footer
      %s20 = sadd.s32 1, %s16
    $region7: #{tpu_custom_call.1} parent=1 // loop_footer_branch
      %15 = sbr.rel target = $region3
    $region8: #{tpu_custom_call.1} parent=1 // loop_exit
      _
    %522 = vsyncpa [#allocation3], 1
    %s523 = scalar_lea.sflag [#allocation3], 1
    %524 = vsyncpa %s523, 1
    %525 = vsyncpa [#allocation6], 1
    %s526 = scalar_lea.sflag [#allocation6], 1
    %527 = vsyncpa %s526, 1
    %528 = vsyncpa [#allocation4], 1
    %s529 = scalar_lea.sflag [#allocation4], 1
    %530 = vsyncpa %s529, 1

</llo_original>
